<compile_context>
chip_gen: v7x
topology: tpu7x:2x2x1
jax: 0.10.0
libtpu: 0.0.40
codegen_flags: <defaults>
</compile_context>

<pallas_src>
import math
import functools

import jax
import jax.numpy as jnp
from jax.experimental import pallas as pl
from jax.experimental.pallas import tpu as pltpu


def _posenc_kernel(x_ref, o_ref, *, min_deg, max_deg):
    # x_ref: (Cp, TILE) in VMEM; o_ref: (Cp*(1+2D), TILE) in VMEM.
    # Cp is the (sublane-packed) channel count; all slab slices below are static.
    c = x_ref.shape[0]
    d = max_deg - min_deg

    # Identity channels.
    o_ref[0:c, :] = x_ref[...].astype(o_ref.dtype)

    # Per-degree streaming: re-load x from VMEM each degree so the live set per
    # unrolled iteration stays small (no spills); results are written directly
    # into static sublane-aligned slabs of the output tile.
    # TODO(synk): for large D, switch to lax.fori_loop with pl.ds slab stores and
    # optionally the power-of-two double-angle sin/cos recurrence (needs a
    # precision check vs. the reference before enabling).
    for i in range(d):
        s = 2.0 ** (min_deg + i)                       # compile-time constant
        xb = x_ref[...].astype(jnp.float32) * s        # (Cp, TILE), lane-dense
        o_ref[(1 + i) * c:(2 + i) * c, :] = jnp.sin(xb).astype(o_ref.dtype)
        o_ref[(1 + d + i) * c:(2 + d + i) * c, :] = jnp.cos(xb).astype(o_ref.dtype)


def _round_up(v, m):
    return ((v + m - 1) // m) * m


def _posenc_channels_first(x3, min_deg, max_deg):
    """x3: (N, C, S) channels-first.  Returns (N, C + 2*D*C, S)."""
    N, C, S = x3.shape
    D = max_deg - min_deg
    C_out = C + 2 * D * C
    itemsize = jnp.dtype(x3.dtype).itemsize
    sublanes = max(8, 32 // itemsize)                  # 8 (f32), 16 (bf16)

    # Sublane packing factor: fold spatial into channels so the second-to-last
    # dim is a multiple of the vreg sublane count.  Row-major (C, S)->(C*k, S/k)
    # preserves element/slab correspondence exactly (verified vs reference).
    k = sublanes // math.gcd(C, sublanes)
    if S < k * 128:                                    # not worth padding tiny inputs
        k = 1
    Cp, C_out_p = C * k, C_out * k

    # Packed lane extent + VMEM-aware lane tile (double-buffered in + out block).
    Sp = pl.cdiv(S, k)
    per_lane = (Cp + C_out_p) * itemsize
    budget = 12 * 1024 * 1024                          # fits v5e/v6e/v7x scoped VMEM
    cap = max(128, min(1024, (budget // (2 * per_lane)) // 128 * 128))
    tile = min(cap, _round_up(Sp, 128))
    # Guarantee >=2 grid steps when N == 1 so both TensorCores get work (v7x).
    if N == 1 and tile >= 256 and pl.cdiv(Sp, tile) < 2:
        tile = _round_up(pl.cdiv(Sp, 2), 128)

    Sp_pad = pl.cdiv(Sp, tile) * tile
    S_pad = Sp_pad * k
    if S_pad != S:
        x3 = jnp.pad(x3, ((0, 0), (0, 0), (0, S_pad - S)))
    xp = x3.reshape(N, Cp, Sp_pad)                     # free row-major reshape

    kernel = functools.partial(_posenc_kernel, min_deg=min_deg, max_deg=max_deg)

    elems = N * S
    cost = pl.CostEstimate(
        flops=2 * D * C * elems,
        transcendentals=2 * D * C * elems,
        bytes_accessed=(C + C_out) * elems * itemsize,
    )

    out_p = pl.pallas_call(
        kernel,
        out_shape=jax.ShapeDtypeStruct((N, C_out_p, Sp_pad), x3.dtype),
        grid_spec=pltpu.PrefetchScalarGridSpec(
            num_scalar_prefetch=0,
            grid=(N, Sp_pad // tile),
            in_specs=[pl.BlockSpec((None, Cp, tile), lambda n, s: (n, 0, s))],
            out_specs=pl.BlockSpec((None, C_out_p, tile), lambda n, s: (n, 0, s)),
        ),
        compiler_params=pltpu.CompilerParams(
            dimension_semantics=("parallel", "parallel"),
            vmem_limit_bytes=32 * 1024 * 1024,
        ),
        cost_estimate=cost,
    )(xp)

    out = out_p.reshape(N, C_out, S_pad)               # free inverse reshape
    if S_pad != S:
        out = out[:, :, :S]
    return out


def nerf_pos_enc(x, min_deg, max_deg, chn_last=False):
    """Pallas implementation of NeRFPosEnc.forward.

    x: (N, C, H, W) NCHW (like the torch module) or any array whose last dim is
       the coordinate/channel dim.
    """
    if x.ndim == 4:
        N, C, H, W = x.shape
        out3 = _posenc_channels_first(x.reshape(N, C, H * W), min_deg, max_deg)
        out = out3.reshape(N, out3.shape[1], H, W)      # NCHW, chn_last=False
        if chn_last:
            # TODO(synk): emit NHWC directly from the kernel (XLU block transpose)
            # to avoid this extra HBM pass over the (1+2D)x-sized output.
            out = jnp.transpose(out, (0, 2, 3, 1))
        return out

    # Generic channels-last input (..., C): transpose to channels-first once,
    # run the same lane-dense kernel, transpose back.
    # TODO(synk): write channels-last directly from the kernel to drop these passes.
    lead = x.shape[:-1]
    C = x.shape[-1]
    R = 1
    for d in lead:
        R *= d
    x3 = x.reshape(R, C).T.reshape(1, C, R)
    out3 = _posenc_channels_first(x3, min_deg, max_deg)  # (1, C_out, R)
    return out3[0].T.reshape(lead + (out3.shape[1],))


def _reference(x, min_deg, max_deg, chn_last=False):
    """Pure-JAX reference mirroring the PyTorch code."""
    is_4d = x.ndim == 4
    if is_4d:
        x = jnp.transpose(x, (0, 2, 3, 1))
    scales = jnp.array([2.0 ** i for i in range(min_deg, max_deg)], x.dtype)
    xb = (x[..., None, :] * scales[:, None]).reshape(x.shape[:-1] + (-1,))
    four = jnp.sin(jnp.concatenate([xb, xb + 0.5 * math.pi], axis=-1))
    out = jnp.concatenate([x, four], axis=-1)
    if is_4d and not chn_last:
        out = jnp.transpose(out, (0, 3, 1, 2))
    return out


if __name__ == "__main__":
    key = jax.random.PRNGKey(0)
    # Small NCHW input consistent with the module's conv-style usage.
    x = jax.random.normal(key, (2, 4, 16, 16), dtype=jnp.float32)

    min_deg, max_deg = 0, 4  # D = 4 frequency bands (deterministic config)

    out = nerf_pos_enc(x, min_deg, max_deg, chn_last=False)
    out = jax.block_until_ready(out)

    ref = _reference(x, min_deg, max_deg, chn_last=False)
    assert out.shape == ref.shape == (2, 4 + 2 * 4 * 4, 16, 16), out.shape
    assert jnp.max(jnp.abs(out - ref)) < 1e-5, "mismatch vs reference"

    # Also check the chn_last=True path.
    out_cl = jax.block_until_ready(nerf_pos_enc(x, min_deg, max_deg, chn_last=True))
    ref_cl = _reference(x, min_deg, max_deg, chn_last=True)
    assert out_cl.shape == ref_cl.shape == (2, 16, 16, 36), out_cl.shape
    assert jnp.max(jnp.abs(out_cl - ref_cl)) < 1e-5, "mismatch vs reference (chn_last)"

    print("KERNEL_OK")
</pallas_src>

<mosaic_0001>
module attributes {stable_mosaic.version = 11 : i64} {
  func.func @_posenc_kernel(%arg0: i32, %arg1: i32, %arg2: memref<1x8x128xf32, #tpu.memory_space<vmem>>, %arg3: memref<1x72x128xf32, #tpu.memory_space<vmem>>) attributes {dimension_semantics = [#tpu.dimension_semantics<parallel>, #tpu.dimension_semantics<parallel>], iteration_bounds = array<i64: 2, 1>, scalar_prefetch = 0 : i64, scratch_operands = 0 : i64, tpu.core_type = #tpu.core_type<tc>, window_params = [{transform_indices = @transform_0, window_bounds = array<i64: 1, 8, 128>}, {transform_indices = @transform_1, window_bounds = array<i64: 1, 72, 128>}]} {
    %c0 = arith.constant 0 : index
    %c0_0 = arith.constant 0 : index
    %c0_1 = arith.constant 0 : index
    %0 = vector.load %arg2[%c0, %c0_0, %c0_1] : memref<1x8x128xf32, #tpu.memory_space<vmem>>, vector<1x8x128xf32>
    %1 = vector.shape_cast %0 : vector<1x8x128xf32> to vector<8x128xf32>
    %c0_2 = arith.constant 0 : index
    %c0_3 = arith.constant 0 : index
    %c0_4 = arith.constant 0 : index
    %2 = vector.load %arg3[%c0_2, %c0_3, %c0_4] : memref<1x72x128xf32, #tpu.memory_space<vmem>>, vector<1x8x128xf32>
    %3 = vector.shape_cast %2 : vector<1x8x128xf32> to vector<8x128xf32>
    %4 = vector.shape_cast %1 : vector<8x128xf32> to vector<1x8x128xf32>
    tpu.vector_store %arg3[%c0_2, %c0_3, %c0_4], %4 {strides = array<i32>} : memref<1x72x128xf32, #tpu.memory_space<vmem>>, vector<1x8x128xf32>,
    %c0_5 = arith.constant 0 : index
    %c0_6 = arith.constant 0 : index
    %c0_7 = arith.constant 0 : index
    %5 = vector.load %arg2[%c0_5, %c0_6, %c0_7] : memref<1x8x128xf32, #tpu.memory_space<vmem>>, vector<1x8x128xf32>
    %6 = vector.shape_cast %5 : vector<1x8x128xf32> to vector<8x128xf32>
    %cst = arith.constant 1.000000e+00 : f32
    %7 = vector.broadcast %cst : f32 to vector<8x128xf32>
    %8 = arith.mulf %6, %7 : vector<8x128xf32>
    %9 = math.sin %8 : vector<8x128xf32>
    %c0_8 = arith.constant 0 : index
    %c8 = arith.constant 8 : index
    %c0_9 = arith.constant 0 : index
    %10 = vector.load %arg3[%c0_8, %c8, %c0_9] : memref<1x72x128xf32, #tpu.memory_space<vmem>>, vector<1x8x128xf32>
    %11 = vector.shape_cast %10 : vector<1x8x128xf32> to vector<8x128xf32>
    %12 = vector.shape_cast %9 : vector<8x128xf32> to vector<1x8x128xf32>
    tpu.vector_store %arg3[%c0_8, %c8, %c0_9], %12 {strides = array<i32>} : memref<1x72x128xf32, #tpu.memory_space<vmem>>, vector<1x8x128xf32>,
    %13 = math.cos %8 : vector<8x128xf32>
    %c0_10 = arith.constant 0 : index
    %c40 = arith.constant 40 : index
    %c0_11 = arith.constant 0 : index
    %14 = vector.load %arg3[%c0_10, %c40, %c0_11] : memref<1x72x128xf32, #tpu.memory_space<vmem>>, vector<1x8x128xf32>
    %15 = vector.shape_cast %14 : vector<1x8x128xf32> to vector<8x128xf32>
    %16 = vector.shape_cast %13 : vector<8x128xf32> to vector<1x8x128xf32>
    tpu.vector_store %arg3[%c0_10, %c40, %c0_11], %16 {strides = array<i32>} : memref<1x72x128xf32, #tpu.memory_space<vmem>>, vector<1x8x128xf32>,
    %c0_12 = arith.constant 0 : index
    %c0_13 = arith.constant 0 : index
    %c0_14 = arith.constant 0 : index
    %17 = vector.load %arg2[%c0_12, %c0_13, %c0_14] : memref<1x8x128xf32, #tpu.memory_space<vmem>>, vector<1x8x128xf32>
    %18 = vector.shape_cast %17 : vector<1x8x128xf32> to vector<8x128xf32>
    %cst_15 = arith.constant 2.000000e+00 : f32
    %19 = vector.broadcast %cst_15 : f32 to vector<8x128xf32>
    %20 = arith.mulf %18, %19 : vector<8x128xf32>
    %21 = math.sin %20 : vector<8x128xf32>
    %c0_16 = arith.constant 0 : index
    %c16 = arith.constant 16 : index
    %c0_17 = arith.constant 0 : index
    %22 = vector.load %arg3[%c0_16, %c16, %c0_17] : memref<1x72x128xf32, #tpu.memory_space<vmem>>, vector<1x8x128xf32>
    %23 = vector.shape_cast %22 : vector<1x8x128xf32> to vector<8x128xf32>
    %24 = vector.shape_cast %21 : vector<8x128xf32> to vector<1x8x128xf32>
    tpu.vector_store %arg3[%c0_16, %c16, %c0_17], %24 {strides = array<i32>} : memref<1x72x128xf32, #tpu.memory_space<vmem>>, vector<1x8x128xf32>,
    %25 = math.cos %20 : vector<8x128xf32>
    %c0_18 = arith.constant 0 : index
    %c48 = arith.constant 48 : index
    %c0_19 = arith.constant 0 : index
    %26 = vector.load %arg3[%c0_18, %c48, %c0_19] : memref<1x72x128xf32, #tpu.memory_space<vmem>>, vector<1x8x128xf32>
    %27 = vector.shape_cast %26 : vector<1x8x128xf32> to vector<8x128xf32>
    %28 = vector.shape_cast %25 : vector<8x128xf32> to vector<1x8x128xf32>
    tpu.vector_store %arg3[%c0_18, %c48, %c0_19], %28 {strides = array<i32>} : memref<1x72x128xf32, #tpu.memory_space<vmem>>, vector<1x8x128xf32>,
    %c0_20 = arith.constant 0 : index
    %c0_21 = arith.constant 0 : index
    %c0_22 = arith.constant 0 : index
    %29 = vector.load %arg2[%c0_20, %c0_21, %c0_22] : memref<1x8x128xf32, #tpu.memory_space<vmem>>, vector<1x8x128xf32>
    %30 = vector.shape_cast %29 : vector<1x8x128xf32> to vector<8x128xf32>
    %cst_23 = arith.constant 4.000000e+00 : f32
    %31 = vector.broadcast %cst_23 : f32 to vector<8x128xf32>
    %32 = arith.mulf %30, %31 : vector<8x128xf32>
    %33 = math.sin %32 : vector<8x128xf32>
    %c0_24 = arith.constant 0 : index
    %c24 = arith.constant 24 : index
    %c0_25 = arith.constant 0 : index
    %34 = vector.load %arg3[%c0_24, %c24, %c0_25] : memref<1x72x128xf32, #tpu.memory_space<vmem>>, vector<1x8x128xf32>
    %35 = vector.shape_cast %34 : vector<1x8x128xf32> to vector<8x128xf32>
    %36 = vector.shape_cast %33 : vector<8x128xf32> to vector<1x8x128xf32>
    tpu.vector_store %arg3[%c0_24, %c24, %c0_25], %36 {strides = array<i32>} : memref<1x72x128xf32, #tpu.memory_space<vmem>>, vector<1x8x128xf32>,
    %37 = math.cos %32 : vector<8x128xf32>
    %c0_26 = arith.constant 0 : index
    %c56 = arith.constant 56 : index
    %c0_27 = arith.constant 0 : index
    %38 = vector.load %arg3[%c0_26, %c56, %c0_27] : memref<1x72x128xf32, #tpu.memory_space<vmem>>, vector<1x8x128xf32>
    %39 = vector.shape_cast %38 : vector<1x8x128xf32> to vector<8x128xf32>
    %40 = vector.shape_cast %37 : vector<8x128xf32> to vector<1x8x128xf32>
    tpu.vector_store %arg3[%c0_26, %c56, %c0_27], %40 {strides = array<i32>} : memref<1x72x128xf32, #tpu.memory_space<vmem>>, vector<1x8x128xf32>,
    %c0_28 = arith.constant 0 : index
    %c0_29 = arith.constant 0 : index
    %c0_30 = arith.constant 0 : index
    %41 = vector.load %arg2[%c0_28, %c0_29, %c0_30] : memref<1x8x128xf32, #tpu.memory_space<vmem>>, vector<1x8x128xf32>
    %42 = vector.shape_cast %41 : vector<1x8x128xf32> to vector<8x128xf32>
    %cst_31 = arith.constant 8.000000e+00 : f32
    %43 = vector.broadcast %cst_31 : f32 to vector<8x128xf32>
    %44 = arith.mulf %42, %43 : vector<8x128xf32>
    %45 = math.sin %44 : vector<8x128xf32>
    %c0_32 = arith.constant 0 : index
    %c32 = arith.constant 32 : index
    %c0_33 = arith.constant 0 : index
    %46 = vector.load %arg3[%c0_32, %c32, %c0_33] : memref<1x72x128xf32, #tpu.memory_space<vmem>>, vector<1x8x128xf32>
    %47 = vector.shape_cast %46 : vector<1x8x128xf32> to vector<8x128xf32>
    %48 = vector.shape_cast %45 : vector<8x128xf32> to vector<1x8x128xf32>
    tpu.vector_store %arg3[%c0_32, %c32, %c0_33], %48 {strides = array<i32>} : memref<1x72x128xf32, #tpu.memory_space<vmem>>, vector<1x8x128xf32>,
    %49 = math.cos %44 : vector<8x128xf32>
    %c0_34 = arith.constant 0 : index
    %c64 = arith.constant 64 : index
    %c0_35 = arith.constant 0 : index
    %50 = vector.load %arg3[%c0_34, %c64, %c0_35] : memref<1x72x128xf32, #tpu.memory_space<vmem>>, vector<1x8x128xf32>
    %51 = vector.shape_cast %50 : vector<1x8x128xf32> to vector<8x128xf32>
    %52 = vector.shape_cast %49 : vector<8x128xf32> to vector<1x8x128xf32>
    tpu.vector_store %arg3[%c0_34, %c64, %c0_35], %52 {strides = array<i32>} : memref<1x72x128xf32, #tpu.memory_space<vmem>>, vector<1x8x128xf32>,
    return
  }
  func.func @transform_0(%arg0: i32, %arg1: i32) -> (i32, i32, i32) {
    %c0_i32 = arith.constant 0 : i32
    %c0_i32_0 = arith.constant 0 : i32
    return %arg0, %c0_i32, %arg1 : i32, i32, i32
  }
  func.func @transform_1(%arg0: i32, %arg1: i32) -> (i32, i32, i32) {
    %c0_i32 = arith.constant 0 : i32
    %c0_i32_0 = arith.constant 0 : i32
    return %arg0, %c0_i32, %arg1 : i32, i32, i32
  }
}

</mosaic_0001>

<llo_original>
// kernel: tpu_custom_call.1
$region0: #{tpu_custom_call.1}
  #allocation0 [shape = 'u32[]', space=smem, size = 0x4, offset = 0x4, fixed_abs, tag = 'smem constant byte address 0x4 - core index']
  #allocation1 [shape = 'u32[144,128]{1,0:T(1,128)}', space=vmem, size = 0x12000, scoped, tag = 'internal scratch']
  %s0 = inlined_call_operand.hbm [shape: f32[2,8,128], index: 0, kind: input, shape index: {}]
  %s1 = inlined_call_operand.hbm [shape: f32[2,72,128], index: 1, kind: output, shape index: {}]
  %s2 = sld [smem:[#allocation0]]
  $region41: #{tpu_custom_call.1} parent=0
    _
  %s4 = ssub.s32 1, %s2
  %s5 = scalar_select 0, %s4, %s2
  $region1: #{tpu_custom_call.1} parent=0
    #allocation2 [shape = 'u8[8192]{0}', space=vmem, size = 0x2000, scoped, tag = 'input window, operand 0']
    #allocation3 [shape = 's32[2]{0}', space=sflag, size = 0x8, scoped, tag = 'scoped memory for tpu_custom_call.1']
    #allocation4 [shape = 's32[2]{0}', space=sflag, size = 0x8, scoped, tag = 'scoped memory for tpu_custom_call.1']
    #allocation5 [shape = 'u8[73728]{0}', space=vmem, size = 0x12000, scoped, tag = 'output window, operand 0']
    %6 = vsyncpa [#allocation3], 0
    %s7 = scalar_lea.sflag [#allocation3], 1
    %8 = vsyncpa %s7, 0
    %9 = vsyncpa [#allocation4], 0
    %s10 = scalar_lea.sflag [#allocation4], 1
    %11 = vsyncpa %s10, 0
    loop: start=0, step=1, limit=4
    $region2: #{tpu_custom_call.1} parent=1 // loop_pre_header
      _
    $region3: #{tpu_custom_call.1} parent=1 // loop_header
      %s13 = sphi 0, %s17
      %p14 = scmp.ge.s32.totalorder %s13, 4
      %s20 = sphi 0, %s32
      %s21 = sphi 0, %s28
      %s22 = sphi 0, %s20
      %s23 = sphi 0, %s21
      %s24 = sphi 0, %s22
      %s25 = sphi 0, %s23
      %s37 = sphi 0, %s39
      %s40 = sphi 0, %s37
      %s41 = sphi 0, %s40
      %s57 = sphi 0, %s41
      %s65 = sphi 0, %s67
      %s68 = sphi 0, %s65
      %s69 = sphi 0, %s68
      %s85 = sphi 0, %s69
    $region4: #{tpu_custom_call.1} parent=1 // loop_header_branch
      %16 = sbr.rel (%p14) target = $region8
    $region5: #{tpu_custom_call.1} parent=1 // loop_body
      %s18 = ssub.s32 %s13, 1
      %s19 = ssub.s32 %s13, 2
      %s26 = sadd.s32 1, %s21
      %p27 = scmp.ge.s32.totalorder %s26, 1
      %s28 = scalar_select %p27, 0, %s26
      %s29 = sadd.s32 1, %s20
      %s30 = scalar_select %p27, %s29, %s20
      %p31 = scmp.ge.s32.totalorder %s30, 2
      %s32 = scalar_select %p31, 0, %s30
      %s33 = ssub.s32 %s20, %s32
      %s34 = ssub.s32 %s21, %s28
      %s35 = sor.u32 %s33, %s34
      %p36 = scmp.eq.s32.totalorder %s35, 0
      %s38 = sadd.s32 %s37, 1
      %s39 = scalar_select %p36, %s37, %s38
      %p42 = pneg %p36
      %p43 = scmp.eq.s32.totalorder %s13, 1
      %p44 = por %p42, %p43
      %p45 = scmp.ne.s32.totalorder %s37, %s40
      %p46 = scmp.eq.s32.totalorder %s13, 0
      %p47 = por %p45, %p46
      %p48 = scmp.ne.s32.totalorder %s37, %s40
      %p49 = scmp.eq.s32.totalorder %s18, 1
      %p50 = por %p48, %p49
      %p51 = scmp.ne.s32.totalorder %s40, %s41
      %p52 = scmp.eq.s32.totalorder %s18, 0
      %p53 = por %p51, %p52
      %p54 = scmp.ne.s32.totalorder %s40, %s41
      %p55 = scmp.eq.s32.totalorder %s19, 1
      %p56 = por %p54, %p55
      %p58 = scmp.ne.s32.totalorder %s41, %s57
      %p59 = scmp.eq.s32.totalorder %s19, 0
      %p60 = por %p58, %p59
      %s61 = ssub.s32 %s20, %s32
      %s62 = ssub.s32 %s21, %s28
      %s63 = sor.u32 %s61, %s62
      %p64 = scmp.eq.s32.totalorder %s63, 0
      %s66 = sadd.s32 %s65, 1
      %s67 = scalar_select %p64, %s65, %s66
      %p70 = pneg %p64
      %p71 = scmp.eq.s32.totalorder %s13, 1
      %p72 = por %p70, %p71
      %p73 = scmp.ne.s32.totalorder %s65, %s68
      %p74 = scmp.eq.s32.totalorder %s13, 0
      %p75 = por %p73, %p74
      %p76 = scmp.ne.s32.totalorder %s65, %s68
      %p77 = scmp.eq.s32.totalorder %s18, 1
      %p78 = por %p76, %p77
      %p79 = scmp.ne.s32.totalorder %s68, %s69
      %p80 = scmp.eq.s32.totalorder %s18, 0
      %p81 = por %p79, %p80
      %p82 = scmp.ne.s32.totalorder %s68, %s69
      %p83 = scmp.eq.s32.totalorder %s19, 1
      %p84 = por %p82, %p83
      %p86 = scmp.ne.s32.totalorder %s69, %s85
      %p87 = scmp.eq.s32.totalorder %s19, 0
      %p88 = por %p86, %p87
      %p89 = scmp.le.s32.totalorder 1, %s13
      %p90 = scmp.lt.s32.totalorder %s13, 3
      %p91 = pnand %p89, %p90
      %p92 = pneg %p91
      // Predicated region
      $region9: #{tpu_custom_call.1} parent=5 // pred_check
        _
      $region10: #{tpu_custom_call.1} parent=5 // pred_check_branch
        %94 = sbr.rel (%p91) target = $region12
      $region11: #{tpu_custom_call.1} parent=5 // pred_region
        %s95 = ssub.s32 %s13, 1
      $region12: #{tpu_custom_call.1} parent=5 // pred_fallthru
        _
      %p96 = scmp.lt.s32.totalorder %s13, 2
      // Predicated region
      $region13: #{tpu_custom_call.1} parent=5 // pred_check
        %p97 = pneg %p96
      $region14: #{tpu_custom_call.1} parent=5 // pred_check_branch
        %99 = sbr.rel (%p97) target = $region16
      $region15: #{tpu_custom_call.1} parent=5 // pred_region
        // Predicated region
        $region17: #{tpu_custom_call.1} parent=15 // pred_check
          %p100 = pneg %p47
        $region18: #{tpu_custom_call.1} parent=15 // pred_check_branch
          %102 = sbr.rel (%p100) target = $region20
        $region19: #{tpu_custom_call.1} parent=15 // pred_region
          %s103 = sand.u32 %s37, 1
          %s104 = scalar_lea.sflag [#allocation3], %s103
          %s105 = sand.u32 %s37, 1
          %s106 = smul.addr %s105, 8
          %s107 = scalar_lea.vmem [#allocation2], %s106
          %s109 = ssub.s32 128, 128
          %110 = vsyncadd %s104, %s109
          %s111 = sadd.s32 %s21, %s20
          %s112 = smul.addr %s111, 128
          %s113 = scalar_lea.hbm %s0, %s112
          %s115 = sshll.u32 %s107, 4
          %s116 = int_to_ptr.vmem [resolvable:$true] %s115
          %118 = dma.hbm_to_vmem [thread:$0]  %s113, 128, %s116, %s104
        $region20: #{tpu_custom_call.1} parent=15 // pred_fallthru
          _
      $region16: #{tpu_custom_call.1} parent=5 // pred_fallthru
        _
      %p119 = scmp.le.s32.totalorder 1, %s13
      %p120 = scmp.lt.s32.totalorder %s13, 3
      %p121 = pnand %p119, %p120
      %p122 = pneg %p121
      // Predicated region
      $region21: #{tpu_custom_call.1} parent=5 // pred_check
        _
      $region22: #{tpu_custom_call.1} parent=5 // pred_check_branch
        %124 = sbr.rel (%p121) target = $region24
      $region23: #{tpu_custom_call.1} parent=5 // pred_region
        %s125 = ssub.s32 %s13, 1
        %s126 = sand.u32 %s40, 1
        %s127 = scalar_lea.sflag [#allocation3], %s126
        %s128 = sand.u32 %s40, 1
        %s129 = smul.addr %s128, 8
        %s130 = scalar_lea.vmem [#allocation2], %s129
        // Predicated region
        $region25: #{tpu_custom_call.1} parent=23 // pred_check
          %p131 = pneg %p53
        $region26: #{tpu_custom_call.1} parent=23 // pred_check_branch
          %133 = sbr.rel (%p131) target = $region28
        $region27: #{tpu_custom_call.1} parent=23 // pred_region
          %134 = dma.done %s127, 128
        $region28: #{tpu_custom_call.1} parent=23 // pred_fallthru
          _
        %s135 = sand.u32 %s40, 1
        %s136 = scalar_lea.sflag [#allocation3], %s135
        %s137 = sand.u32 %s40, 1
        %s138 = smul.addr %s137, 8
        %s139 = scalar_lea.vmem [#allocation2], %s138
        %p140 = pneg %p53
        %p141 = pneg %p50
        %p142 = pneg %p81
        %p143 = pneg %p78
        %s144 = sand.u32 %s68, 1
        %s145 = scalar_lea.sflag [#allocation4], %s144
        %s146 = sand.u32 %s68, 1
        %s147 = smul.addr %s146, 72
        %s148 = scalar_lea.vmem [#allocation5], %s147
        %v149 = vld [vmem:[%s130] sm:$0xff]
        %150 = vst [vmem:[%s148] sm:$0xff] %v149
        %v151 = vld [vmem:[%s130] sm:$0xff]
        %v152 = vand.u32 2147483647, %v151
        %vm153 = vcmp.le.f32.partialorder %v152, 0.7853982
        %vm154 = vcmp.lt.s32.totalorder %v151, 0
        %v155 = vand.u32 %v151, 2139095040
        %v156 = vshrl.u32 %v155, 23
        %v157 = vsub.s32 %v156, 127
        %v158 = vand.u32 2147483647, %v151
        %v159 = vand.u32 %v158, 8388607
        %v160 = vor.u32 %v159, 8388608
        %v161 = vsub.s32 0, %v160
        %v162 = vadd.s32 %v157, 1
        %vm163 = vcmp.gt.s32.totalorder %v162, 0
        %v164 = vsel %vm163, %v162, 0
        %v165 = vshrl.u32 %v164, 5
        %v166 = vand.u32 %v164, 31
        %v167 = vsub.s32 32, %v166
        %v168 = vshrl.u32 683565275, %v167
        %v169 = vshll.u32 683565275, %v166
        %v170 = vshrl.u32 2475754826, %v167
        %v171 = vor.u32 %v169, %v170
        %v172 = vshll.u32 2475754826, %v166
        %v173 = vshrl.u32 2131351028, %v167
        %v174 = vor.u32 %v172, %v173
        %v175 = vshll.u32 2131351028, %v166
        %v176 = vshrl.u32 2102212464, %v167
        %v177 = vor.u32 %v175, %v176
        %v178 = vshll.u32 2102212464, %v166
        %v179 = vshrl.u32 920167782, %v167
        %v180 = vor.u32 %v178, %v179
        %v181 = vshll.u32 920167782, %v166
        %v182 = vshrl.u32 1326507024, %v167
        %v183 = vor.u32 %v181, %v182
        %vm184 = vcmp.lt.s32.totalorder %v165, 1
        %vm185 = vcmp.lt.s32.totalorder %v165, 2
        %vm186 = vcmp.lt.s32.totalorder %v165, 3
        %vm187 = vcmp.lt.s32.totalorder %v165, 4
        %v188 = vsel %vm184, %v168, %v171
        %v189 = vsel %vm187, %v177, 2102212464
        %v190 = vsel %vm186, %v174, %v189
        %v191 = vsel %vm185, %v188, %v190
        %v192 = vsel %vm184, %v171, %v174
        %v193 = vsel %vm187, %v180, 920167782
        %v194 = vsel %vm186, %v177, %v193
        %v195 = vsel %vm185, %v192, %v194
        %v196 = vsel %vm184, %v174, %v177
        %v197 = vsel %vm187, %v183, 1326507024
        %v198 = vsel %vm186, %v180, %v197
        %v199 = vsel %vm185, %v196, %v198
        %v200 = vshll.u32 %v160, 8
        %v201 = vmul.u32.u64.compose %v200, %v199
        %v202 = vextract.low.u32 %v201
        %v203 = vextract.high.u32 %v201
        %v204 = vmul.u32.u64.compose %v200, %v195
        %v205 = vextract.low.u32 %v204
        %v206 = vextract.high.u32 %v204
        %v207 = vmul.u32 %v200, %v191
        %v208 = vadd.s32 %v203, %v205
        %vm209 = vc.u32 %v203, %v205
        %v210 = vadd.s32 %v206, 1
        %v211 = vsel %vm209, %v210, %v206
        %v212 = vadd.s32 %v207, %v211
        %v213 = vadd.s32 %v212, 536870912
        %v214 = vshrl.u32 %v213, 30
        %v215 = vshll.u32 %v214, 30
        %v216 = vsub.s32 %v212, %v215
        %vm217 = vcmp.lt.s32.totalorder %v216, 0
        %v218 = vsub.s32 0, %v216
        %v219 = vsel %vm217, %v218, %v216
        %v220 = vclz %v219
        %v221 = vsub.s32 %v220, 2
        %vm222 = vcmp.gt.s32.totalorder 0, %v221
        %v223 = vsel %vm222, 0, %v221
        %v224 = vsub.s32 32, %v223
        %v225 = vshll.u32 %v216, %v223
        %v226 = vshrl.u32 %v208, %v224
        %v227 = vor.u32 %v225, %v226
        %v228 = vsub.s32 4294967266, %v223
        %v229 = vadd.s32 %v228, 127
        %v230 = vshll.u32 %v229, 23
        %v231 = vor.u32 4788187, %v230
        %v232 = vand.u32 2147483647, %v231
        %v234 = vcvt.s32.f32 %v227
        %v235 = vmul.f32 %v234, %v232
        %v236 = vxor.u32 %v235, 2147483648
        %v237 = vsel %vm154, %v236, %v235
        %v238 = vsub.s32 4, %v214
        %v239 = vsel %vm154, %v238, %v214
        %v240 = vsel %vm153, %v151, %v237
        %v241 = vsel %vm153, 0, %v239
        %v242 = vcosq.f32.pop %v240
        %v243 = vsinq.f32.pop %v240
        %vm244 = vweird.f32 %v151
        %v245 = vadd.s32 %v241, 3
        %v246 = vand.u32 %v245, 3
        %vm247 = vcmp.lt.s32.totalorder %v246, 2
        %vm248 = vcmp.eq.s32.totalorder %v246, 0
        %v249 = vxor.u32 %v243, 2147483648
        %v250 = vsel %vm248, %v242, %v249
        %vm251 = vcmp.eq.s32.totalorder %v246, 2
        %v252 = vxor.u32 %v242, 2147483648
        %v253 = vsel %vm251, %v252, %v243
        %v254 = vsel %vm247, %v250, %v253
        %v255 = vsel %vm244, nan, %v254
        %256 = vst [vmem:[%s148 + $0x8] sm:$0xff] %v255
        %v257 = vand.u32 2147483647, %v151
        %vm258 = vcmp.le.f32.partialorder %v257, 0.7853982
        %vm259 = vcmp.lt.s32.totalorder %v151, 0
        %v260 = vand.u32 %v151, 2139095040
        %v261 = vshrl.u32 %v260, 23
        %v262 = vsub.s32 %v261, 127
        %v263 = vand.u32 2147483647, %v151
        %v264 = vand.u32 %v263, 8388607
        %v265 = vor.u32 %v264, 8388608
        %v266 = vsub.s32 0, %v265
        %v267 = vadd.s32 %v262, 1
        %vm268 = vcmp.gt.s32.totalorder %v267, 0
        %v269 = vsel %vm268, %v267, 0
        %v270 = vshrl.u32 %v269, 5
        %v271 = vand.u32 %v269, 31
        %v272 = vsub.s32 32, %v271
        %v273 = vshrl.u32 683565275, %v272
        %v274 = vshll.u32 683565275, %v271
        %v275 = vshrl.u32 2475754826, %v272
        %v276 = vor.u32 %v274, %v275
        %v277 = vshll.u32 2475754826, %v271
        %v278 = vshrl.u32 2131351028, %v272
        %v279 = vor.u32 %v277, %v278
        %v280 = vshll.u32 2131351028, %v271
        %v281 = vshrl.u32 2102212464, %v272
        %v282 = vor.u32 %v280, %v281
        %v283 = vshll.u32 2102212464, %v271
        %v284 = vshrl.u32 920167782, %v272
        %v285 = vor.u32 %v283, %v284
        %v286 = vshll.u32 920167782, %v271
        %v287 = vshrl.u32 1326507024, %v272
        %v288 = vor.u32 %v286, %v287
        %vm289 = vcmp.lt.s32.totalorder %v270, 1
        %vm290 = vcmp.lt.s32.totalorder %v270, 2
        %vm291 = vcmp.lt.s32.totalorder %v270, 3
        %vm292 = vcmp.lt.s32.totalorder %v270, 4
        %v293 = vsel %vm289, %v273, %v276
        %v294 = vsel %vm292, %v282, 2102212464
        %v295 = vsel %vm291, %v279, %v294
        %v296 = vsel %vm290, %v293, %v295
        %v297 = vsel %vm289, %v276, %v279
        %v298 = vsel %vm292, %v285, 920167782
        %v299 = vsel %vm291, %v282, %v298
        %v300 = vsel %vm290, %v297, %v299
        %v301 = vsel %vm289, %v279, %v282
        %v302 = vsel %vm292, %v288, 1326507024
        %v303 = vsel %vm291, %v285, %v302
        %v304 = vsel %vm290, %v301, %v303
        %v305 = vshll.u32 %v265, 8
        %v306 = vmul.u32.u64.compose %v305, %v304
        %v307 = vextract.low.u32 %v306
        %v308 = vextract.high.u32 %v306
        %v309 = vmul.u32.u64.compose %v305, %v300
        %v310 = vextract.low.u32 %v309
        %v311 = vextract.high.u32 %v309
        %v312 = vmul.u32 %v305, %v296
        %v313 = vadd.s32 %v308, %v310
        %vm314 = vc.u32 %v308, %v310
        %v315 = vadd.s32 %v311, 1
        %v316 = vsel %vm314, %v315, %v311
        %v317 = vadd.s32 %v312, %v316
        %v318 = vadd.s32 %v317, 536870912
        %v319 = vshrl.u32 %v318, 30
        %v320 = vshll.u32 %v319, 30
        %v321 = vsub.s32 %v317, %v320
        %vm322 = vcmp.lt.s32.totalorder %v321, 0
        %v323 = vsub.s32 0, %v321
        %v324 = vsel %vm322, %v323, %v321
        %v325 = vclz %v324
        %v326 = vsub.s32 %v325, 2
        %vm327 = vcmp.gt.s32.totalorder 0, %v326
        %v328 = vsel %vm327, 0, %v326
        %v329 = vsub.s32 32, %v328
        %v330 = vshll.u32 %v321, %v328
        %v331 = vshrl.u32 %v313, %v329
        %v332 = vor.u32 %v330, %v331
        %v333 = vsub.s32 4294967266, %v328
        %v334 = vadd.s32 %v333, 127
        %v335 = vshll.u32 %v334, 23
        %v336 = vor.u32 4788187, %v335
        %v337 = vand.u32 2147483647, %v336
        %v339 = vcvt.s32.f32 %v332
        %v340 = vmul.f32 %v339, %v337
        %v341 = vxor.u32 %v340, 2147483648
        %v342 = vsel %vm259, %v341, %v340
        %v343 = vsub.s32 4, %v319
        %v344 = vsel %vm259, %v343, %v319
        %v345 = vsel %vm258, %v151, %v342
        %v346 = vsel %vm258, 0, %v344
        %v347 = vcosq.f32.pop %v345
        %v348 = vsinq.f32.pop %v345
        %vm349 = vweird.f32 %v151
        %v350 = vand.u32 %v346, 3
        %vm351 = vcmp.lt.s32.totalorder %v350, 2
        %vm352 = vcmp.eq.s32.totalorder %v350, 0
        %v353 = vxor.u32 %v348, 2147483648
        %v354 = vsel %vm352, %v347, %v353
        %vm355 = vcmp.eq.s32.totalorder %v350, 2
        %v356 = vxor.u32 %v347, 2147483648
        %v357 = vsel %vm355, %v356, %v348
        %v358 = vsel %vm351, %v354, %v357
        %v359 = vsel %vm349, nan, %v358
        %360 = vst [vmem:[%s148 + $0x28] sm:$0xff] %v359
        %v361 = vld [vmem:[%s130] sm:$0xff]
        %v362 = vmul.f32 %v361, 2.0
        %v363 = vand.u32 2147483647, %v362
        %vm364 = vcmp.le.f32.partialorder %v363, 0.7853982
        %vm365 = vcmp.lt.s32.totalorder %v362, 0
        %v366 = vand.u32 %v362, 2139095040
        %v367 = vshrl.u32 %v366, 23
        %v368 = vsub.s32 %v367, 127
        %v369 = vand.u32 2147483647, %v362
        %v370 = vand.u32 %v369, 8388607
        %v371 = vor.u32 %v370, 8388608
        %v372 = vsub.s32 0, %v371
        %v373 = vadd.s32 %v368, 1
        %vm374 = vcmp.gt.s32.totalorder %v373, 0
        %v375 = vsel %vm374, %v373, 0
        %v376 = vshrl.u32 %v375, 5
        %v377 = vand.u32 %v375, 31
        %v378 = vsub.s32 32, %v377
        %v379 = vshrl.u32 683565275, %v378
        %v380 = vshll.u32 683565275, %v377
        %v381 = vshrl.u32 2475754826, %v378
        %v382 = vor.u32 %v380, %v381
        %v383 = vshll.u32 2475754826, %v377
        %v384 = vshrl.u32 2131351028, %v378
        %v385 = vor.u32 %v383, %v384
        %v386 = vshll.u32 2131351028, %v377
        %v387 = vshrl.u32 2102212464, %v378
        %v388 = vor.u32 %v386, %v387
        %v389 = vshll.u32 2102212464, %v377
        %v390 = vshrl.u32 920167782, %v378
        %v391 = vor.u32 %v389, %v390
        %v392 = vshll.u32 920167782, %v377
        %v393 = vshrl.u32 1326507024, %v378
        %v394 = vor.u32 %v392, %v393
        %vm395 = vcmp.lt.s32.totalorder %v376, 1
        %vm396 = vcmp.lt.s32.totalorder %v376, 2
        %vm397 = vcmp.lt.s32.totalorder %v376, 3
        %vm398 = vcmp.lt.s32.totalorder %v376, 4
        %v399 = vsel %vm395, %v379, %v382
        %v400 = vsel %vm398, %v388, 2102212464
        %v401 = vsel %vm397, %v385, %v400
        %v402 = vsel %vm396, %v399, %v401
        %v403 = vsel %vm395, %v382, %v385
        %v404 = vsel %vm398, %v391, 920167782
        %v405 = vsel %vm397, %v388, %v404
        %v406 = vsel %vm396, %v403, %v405
        %v407 = vsel %vm395, %v385, %v388
        %v408 = vsel %vm398, %v394, 1326507024
        %v409 = vsel %vm397, %v391, %v408
        %v410 = vsel %vm396, %v407, %v409
        %v411 = vshll.u32 %v371, 8
        %v412 = vmul.u32.u64.compose %v411, %v410
        %v413 = vextract.low.u32 %v412
        %v414 = vextract.high.u32 %v412
        %v415 = vmul.u32.u64.compose %v411, %v406
        %v416 = vextract.low.u32 %v415
        %v417 = vextract.high.u32 %v415
        %v418 = vmul.u32 %v411, %v402
        %v419 = vadd.s32 %v414, %v416
        %vm420 = vc.u32 %v414, %v416
        %v421 = vadd.s32 %v417, 1
        %v422 = vsel %vm420, %v421, %v417
        %v423 = vadd.s32 %v418, %v422
        %v424 = vadd.s32 %v423, 536870912
        %v425 = vshrl.u32 %v424, 30
        %v426 = vshll.u32 %v425, 30
        %v427 = vsub.s32 %v423, %v426
        %vm428 = vcmp.lt.s32.totalorder %v427, 0
        %v429 = vsub.s32 0, %v427
        %v430 = vsel %vm428, %v429, %v427
        %v431 = vclz %v430
        %v432 = vsub.s32 %v431, 2
        %vm433 = vcmp.gt.s32.totalorder 0, %v432
        %v434 = vsel %vm433, 0, %v432
        %v435 = vsub.s32 32, %v434
        %v436 = vshll.u32 %v427, %v434
        %v437 = vshrl.u32 %v419, %v435
        %v438 = vor.u32 %v436, %v437
        %v439 = vsub.s32 4294967266, %v434
        %v440 = vadd.s32 %v439, 127
        %v441 = vshll.u32 %v440, 23
        %v442 = vor.u32 4788187, %v441
        %v443 = vand.u32 2147483647, %v442
        %v445 = vcvt.s32.f32 %v438
        %v446 = vmul.f32 %v445, %v443
        %v447 = vxor.u32 %v446, 2147483648
        %v448 = vsel %vm365, %v447, %v446
        %v449 = vsub.s32 4, %v425
        %v450 = vsel %vm365, %v449, %v425
        %v451 = vsel %vm364, %v362, %v448
        %v452 = vsel %vm364, 0, %v450
        %v453 = vcosq.f32.pop %v451
        %v454 = vsinq.f32.pop %v451
        %vm455 = vweird.f32 %v362
        %v456 = vadd.s32 %v452, 3
        %v457 = vand.u32 %v456, 3
        %vm458 = vcmp.lt.s32.totalorder %v457, 2
        %vm459 = vcmp.eq.s32.totalorder %v457, 0
        %v460 = vxor.u32 %v454, 2147483648
        %v461 = vsel %vm459, %v453, %v460
        %vm462 = vcmp.eq.s32.totalorder %v457, 2
        %v463 = vxor.u32 %v453, 2147483648
        %v464 = vsel %vm462, %v463, %v454
        %v465 = vsel %vm458, %v461, %v464
        %v466 = vsel %vm455, nan, %v465
        %467 = vst [vmem:[%s148 + $0x10] sm:$0xff] %v466
        %v468 = vand.u32 2147483647, %v362
        %vm469 = vcmp.le.f32.partialorder %v468, 0.7853982
        %vm470 = vcmp.lt.s32.totalorder %v362, 0
        %v471 = vand.u32 %v362, 2139095040
        %v472 = vshrl.u32 %v471, 23
        %v473 = vsub.s32 %v472, 127
        %v474 = vand.u32 2147483647, %v362
        %v475 = vand.u32 %v474, 8388607
        %v476 = vor.u32 %v475, 8388608
        %v477 = vsub.s32 0, %v476
        %v478 = vadd.s32 %v473, 1
        %vm479 = vcmp.gt.s32.totalorder %v478, 0
        %v480 = vsel %vm479, %v478, 0
        %v481 = vshrl.u32 %v480, 5
        %v482 = vand.u32 %v480, 31
        %v483 = vsub.s32 32, %v482
        %v484 = vshrl.u32 683565275, %v483
        %v485 = vshll.u32 683565275, %v482
        %v486 = vshrl.u32 2475754826, %v483
        %v487 = vor.u32 %v485, %v486
        %v488 = vshll.u32 2475754826, %v482
        %v489 = vshrl.u32 2131351028, %v483
        %v490 = vor.u32 %v488, %v489
        %v491 = vshll.u32 2131351028, %v482
        %v492 = vshrl.u32 2102212464, %v483
        %v493 = vor.u32 %v491, %v492
        %v494 = vshll.u32 2102212464, %v482
        %v495 = vshrl.u32 920167782, %v483
        %v496 = vor.u32 %v494, %v495
        %v497 = vshll.u32 920167782, %v482
        %v498 = vshrl.u32 1326507024, %v483
        %v499 = vor.u32 %v497, %v498
        %vm500 = vcmp.lt.s32.totalorder %v481, 1
        %vm501 = vcmp.lt.s32.totalorder %v481, 2
        %vm502 = vcmp.lt.s32.totalorder %v481, 3
        %vm503 = vcmp.lt.s32.totalorder %v481, 4
        %v504 = vsel %vm500, %v484, %v487
        %v505 = vsel %vm503, %v493, 2102212464
        %v506 = vsel %vm502, %v490, %v505
        %v507 = vsel %vm501, %v504, %v506
        %v508 = vsel %vm500, %v487, %v490
        %v509 = vsel %vm503, %v496, 920167782
        %v510 = vsel %vm502, %v493, %v509
        %v511 = vsel %vm501, %v508, %v510
        %v512 = vsel %vm500, %v490, %v493
        %v513 = vsel %vm503, %v499, 1326507024
        %v514 = vsel %vm502, %v496, %v513
        %v515 = vsel %vm501, %v512, %v514
        %v516 = vshll.u32 %v476, 8
        %v517 = vmul.u32.u64.compose %v516, %v515
        %v518 = vextract.low.u32 %v517
        %v519 = vextract.high.u32 %v517
        %v520 = vmul.u32.u64.compose %v516, %v511
        %v521 = vextract.low.u32 %v520
        %v522 = vextract.high.u32 %v520
        %v523 = vmul.u32 %v516, %v507
        %v524 = vadd.s32 %v519, %v521
        %vm525 = vc.u32 %v519, %v521
        %v526 = vadd.s32 %v522, 1
        %v527 = vsel %vm525, %v526, %v522
        %v528 = vadd.s32 %v523, %v527
        %v529 = vadd.s32 %v528, 536870912
        %v530 = vshrl.u32 %v529, 30
        %v531 = vshll.u32 %v530, 30
        %v532 = vsub.s32 %v528, %v531
        %vm533 = vcmp.lt.s32.totalorder %v532, 0
        %v534 = vsub.s32 0, %v532
        %v535 = vsel %vm533, %v534, %v532
        %v536 = vclz %v535
        %v537 = vsub.s32 %v536, 2
        %vm538 = vcmp.gt.s32.totalorder 0, %v537
        %v539 = vsel %vm538, 0, %v537
        %v540 = vsub.s32 32, %v539
        %v541 = vshll.u32 %v532, %v539
        %v542 = vshrl.u32 %v524, %v540
        %v543 = vor.u32 %v541, %v542
        %v544 = vsub.s32 4294967266, %v539
        %v545 = vadd.s32 %v544, 127
        %v546 = vshll.u32 %v545, 23
        %v547 = vor.u32 4788187, %v546
        %v548 = vand.u32 2147483647, %v547
        %v550 = vcvt.s32.f32 %v543
        %v551 = vmul.f32 %v550, %v548
        %v552 = vxor.u32 %v551, 2147483648
        %v553 = vsel %vm470, %v552, %v551
        %v554 = vsub.s32 4, %v530
        %v555 = vsel %vm470, %v554, %v530
        %v556 = vsel %vm469, %v362, %v553
        %v557 = vsel %vm469, 0, %v555
        %v558 = vcosq.f32.pop %v556
        %v559 = vsinq.f32.pop %v556
        %vm560 = vweird.f32 %v362
        %v561 = vand.u32 %v557, 3
        %vm562 = vcmp.lt.s32.totalorder %v561, 2
        %vm563 = vcmp.eq.s32.totalorder %v561, 0
        %v564 = vxor.u32 %v559, 2147483648
        %v565 = vsel %vm563, %v558, %v564
        %vm566 = vcmp.eq.s32.totalorder %v561, 2
        %v567 = vxor.u32 %v558, 2147483648
        %v568 = vsel %vm566, %v567, %v559
        %v569 = vsel %vm562, %v565, %v568
        %v570 = vsel %vm560, nan, %v569
        %571 = vst [vmem:[%s148 + $0x30] sm:$0xff] %v570
        %v572 = vld [vmem:[%s130] sm:$0xff]
        %v573 = vmul.f32 %v572, 4.0
        %v574 = vand.u32 2147483647, %v573
        %vm575 = vcmp.le.f32.partialorder %v574, 0.7853982
        %vm576 = vcmp.lt.s32.totalorder %v573, 0
        %v577 = vand.u32 %v573, 2139095040
        %v578 = vshrl.u32 %v577, 23
        %v579 = vsub.s32 %v578, 127
        %v580 = vand.u32 2147483647, %v573
        %v581 = vand.u32 %v580, 8388607
        %v582 = vor.u32 %v581, 8388608
        %v583 = vsub.s32 0, %v582
        %v584 = vadd.s32 %v579, 1
        %vm585 = vcmp.gt.s32.totalorder %v584, 0
        %v586 = vsel %vm585, %v584, 0
        %v587 = vshrl.u32 %v586, 5
        %v588 = vand.u32 %v586, 31
        %v589 = vsub.s32 32, %v588
        %v590 = vshrl.u32 683565275, %v589
        %v591 = vshll.u32 683565275, %v588
        %v592 = vshrl.u32 2475754826, %v589
        %v593 = vor.u32 %v591, %v592
        %v594 = vshll.u32 2475754826, %v588
        %v595 = vshrl.u32 2131351028, %v589
        %v596 = vor.u32 %v594, %v595
        %v597 = vshll.u32 2131351028, %v588
        %v598 = vshrl.u32 2102212464, %v589
        %v599 = vor.u32 %v597, %v598
        %v600 = vshll.u32 2102212464, %v588
        %v601 = vshrl.u32 920167782, %v589
        %v602 = vor.u32 %v600, %v601
        %v603 = vshll.u32 920167782, %v588
        %v604 = vshrl.u32 1326507024, %v589
        %v605 = vor.u32 %v603, %v604
        %vm606 = vcmp.lt.s32.totalorder %v587, 1
        %vm607 = vcmp.lt.s32.totalorder %v587, 2
        %vm608 = vcmp.lt.s32.totalorder %v587, 3
        %vm609 = vcmp.lt.s32.totalorder %v587, 4
        %v610 = vsel %vm606, %v590, %v593
        %v611 = vsel %vm609, %v599, 2102212464
        %v612 = vsel %vm608, %v596, %v611
        %v613 = vsel %vm607, %v610, %v612
        %v614 = vsel %vm606, %v593, %v596
        %v615 = vsel %vm609, %v602, 920167782
        %v616 = vsel %vm608, %v599, %v615
        %v617 = vsel %vm607, %v614, %v616
        %v618 = vsel %vm606, %v596, %v599
        %v619 = vsel %vm609, %v605, 1326507024
        %v620 = vsel %vm608, %v602, %v619
        %v621 = vsel %vm607, %v618, %v620
        %v622 = vshll.u32 %v582, 8
        %v623 = vmul.u32.u64.compose %v622, %v621
        %v624 = vextract.low.u32 %v623
        %v625 = vextract.high.u32 %v623
        %v626 = vmul.u32.u64.compose %v622, %v617
        %v627 = vextract.low.u32 %v626
        %v628 = vextract.high.u32 %v626
        %v629 = vmul.u32 %v622, %v613
        %v630 = vadd.s32 %v625, %v627
        %vm631 = vc.u32 %v625, %v627
        %v632 = vadd.s32 %v628, 1
        %v633 = vsel %vm631, %v632, %v628
        %v634 = vadd.s32 %v629, %v633
        %v635 = vadd.s32 %v634, 536870912
        %v636 = vshrl.u32 %v635, 30
        %v637 = vshll.u32 %v636, 30
        %v638 = vsub.s32 %v634, %v637
        %vm639 = vcmp.lt.s32.totalorder %v638, 0
        %v640 = vsub.s32 0, %v638
        %v641 = vsel %vm639, %v640, %v638
        %v642 = vclz %v641
        %v643 = vsub.s32 %v642, 2
        %vm644 = vcmp.gt.s32.totalorder 0, %v643
        %v645 = vsel %vm644, 0, %v643
        %v646 = vsub.s32 32, %v645
        %v647 = vshll.u32 %v638, %v645
        %v648 = vshrl.u32 %v630, %v646
        %v649 = vor.u32 %v647, %v648
        %v650 = vsub.s32 4294967266, %v645
        %v651 = vadd.s32 %v650, 127
        %v652 = vshll.u32 %v651, 23
        %v653 = vor.u32 4788187, %v652
        %v654 = vand.u32 2147483647, %v653
        %v656 = vcvt.s32.f32 %v649
        %v657 = vmul.f32 %v656, %v654
        %v658 = vxor.u32 %v657, 2147483648
        %v659 = vsel %vm576, %v658, %v657
        %v660 = vsub.s32 4, %v636
        %v661 = vsel %vm576, %v660, %v636
        %v662 = vsel %vm575, %v573, %v659
        %v663 = vsel %vm575, 0, %v661
        %v664 = vcosq.f32.pop %v662
        %v665 = vsinq.f32.pop %v662
        %vm666 = vweird.f32 %v573
        %v667 = vadd.s32 %v663, 3
        %v668 = vand.u32 %v667, 3
        %vm669 = vcmp.lt.s32.totalorder %v668, 2
        %vm670 = vcmp.eq.s32.totalorder %v668, 0
        %v671 = vxor.u32 %v665, 2147483648
        %v672 = vsel %vm670, %v664, %v671
        %vm673 = vcmp.eq.s32.totalorder %v668, 2
        %v674 = vxor.u32 %v664, 2147483648
        %v675 = vsel %vm673, %v674, %v665
        %v676 = vsel %vm669, %v672, %v675
        %v677 = vsel %vm666, nan, %v676
        %678 = vst [vmem:[%s148 + $0x18] sm:$0xff] %v677
        %v679 = vand.u32 2147483647, %v573
        %vm680 = vcmp.le.f32.partialorder %v679, 0.7853982
        %vm681 = vcmp.lt.s32.totalorder %v573, 0
        %v682 = vand.u32 %v573, 2139095040
        %v683 = vshrl.u32 %v682, 23
        %v684 = vsub.s32 %v683, 127
        %v685 = vand.u32 2147483647, %v573
        %v686 = vand.u32 %v685, 8388607
        %v687 = vor.u32 %v686, 8388608
        %v688 = vsub.s32 0, %v687
        %v689 = vadd.s32 %v684, 1
        %vm690 = vcmp.gt.s32.totalorder %v689, 0
        %v691 = vsel %vm690, %v689, 0
        %v692 = vshrl.u32 %v691, 5
        %v693 = vand.u32 %v691, 31
        %v694 = vsub.s32 32, %v693
        %v695 = vshrl.u32 683565275, %v694
        %v696 = vshll.u32 683565275, %v693
        %v697 = vshrl.u32 2475754826, %v694
        %v698 = vor.u32 %v696, %v697
        %v699 = vshll.u32 2475754826, %v693
        %v700 = vshrl.u32 2131351028, %v694
        %v701 = vor.u32 %v699, %v700
        %v702 = vshll.u32 2131351028, %v693
        %v703 = vshrl.u32 2102212464, %v694
        %v704 = vor.u32 %v702, %v703
        %v705 = vshll.u32 2102212464, %v693
        %v706 = vshrl.u32 920167782, %v694
        %v707 = vor.u32 %v705, %v706
        %v708 = vshll.u32 920167782, %v693
        %v709 = vshrl.u32 1326507024, %v694
        %v710 = vor.u32 %v708, %v709
        %vm711 = vcmp.lt.s32.totalorder %v692, 1
        %vm712 = vcmp.lt.s32.totalorder %v692, 2
        %vm713 = vcmp.lt.s32.totalorder %v692, 3
        %vm714 = vcmp.lt.s32.totalorder %v692, 4
        %v715 = vsel %vm711, %v695, %v698
        %v716 = vsel %vm714, %v704, 2102212464
        %v717 = vsel %vm713, %v701, %v716
        %v718 = vsel %vm712, %v715, %v717
        %v719 = vsel %vm711, %v698, %v701
        %v720 = vsel %vm714, %v707, 920167782
        %v721 = vsel %vm713, %v704, %v720
        %v722 = vsel %vm712, %v719, %v721
        %v723 = vsel %vm711, %v701, %v704
        %v724 = vsel %vm714, %v710, 1326507024
        %v725 = vsel %vm713, %v707, %v724
        %v726 = vsel %vm712, %v723, %v725
        %v727 = vshll.u32 %v687, 8
        %v728 = vmul.u32.u64.compose %v727, %v726
        %v729 = vextract.low.u32 %v728
        %v730 = vextract.high.u32 %v728
        %v731 = vmul.u32.u64.compose %v727, %v722
        %v732 = vextract.low.u32 %v731
        %v733 = vextract.high.u32 %v731
        %v734 = vmul.u32 %v727, %v718
        %v735 = vadd.s32 %v730, %v732
        %vm736 = vc.u32 %v730, %v732
        %v737 = vadd.s32 %v733, 1
        %v738 = vsel %vm736, %v737, %v733
        %v739 = vadd.s32 %v734, %v738
        %v740 = vadd.s32 %v739, 536870912
        %v741 = vshrl.u32 %v740, 30
        %v742 = vshll.u32 %v741, 30
        %v743 = vsub.s32 %v739, %v742
        %vm744 = vcmp.lt.s32.totalorder %v743, 0
        %v745 = vsub.s32 0, %v743
        %v746 = vsel %vm744, %v745, %v743
        %v747 = vclz %v746
        %v748 = vsub.s32 %v747, 2
        %vm749 = vcmp.gt.s32.totalorder 0, %v748
        %v750 = vsel %vm749, 0, %v748
        %v751 = vsub.s32 32, %v750
        %v752 = vshll.u32 %v743, %v750
        %v753 = vshrl.u32 %v735, %v751
        %v754 = vor.u32 %v752, %v753
        %v755 = vsub.s32 4294967266, %v750
        %v756 = vadd.s32 %v755, 127
        %v757 = vshll.u32 %v756, 23
        %v758 = vor.u32 4788187, %v757
        %v759 = vand.u32 2147483647, %v758
        %v761 = vcvt.s32.f32 %v754
        %v762 = vmul.f32 %v761, %v759
        %v763 = vxor.u32 %v762, 2147483648
        %v764 = vsel %vm681, %v763, %v762
        %v765 = vsub.s32 4, %v741
        %v766 = vsel %vm681, %v765, %v741
        %v767 = vsel %vm680, %v573, %v764
        %v768 = vsel %vm680, 0, %v766
        %v769 = vcosq.f32.pop %v767
        %v770 = vsinq.f32.pop %v767
        %vm771 = vweird.f32 %v573
        %v772 = vand.u32 %v768, 3
        %vm773 = vcmp.lt.s32.totalorder %v772, 2
        %vm774 = vcmp.eq.s32.totalorder %v772, 0
        %v775 = vxor.u32 %v770, 2147483648
        %v776 = vsel %vm774, %v769, %v775
        %vm777 = vcmp.eq.s32.totalorder %v772, 2
        %v778 = vxor.u32 %v769, 2147483648
        %v779 = vsel %vm777, %v778, %v770
        %v780 = vsel %vm773, %v776, %v779
        %v781 = vsel %vm771, nan, %v780
        %782 = vst [vmem:[%s148 + $0x38] sm:$0xff] %v781
        %v783 = vld [vmem:[%s130] sm:$0xff]
        %v784 = vmul.f32 %v783, 8.0
        %v785 = vand.u32 2147483647, %v784
        %vm786 = vcmp.le.f32.partialorder %v785, 0.7853982
        %vm787 = vcmp.lt.s32.totalorder %v784, 0
        %v788 = vand.u32 %v784, 2139095040
        %v789 = vshrl.u32 %v788, 23
        %v790 = vsub.s32 %v789, 127
        %v791 = vand.u32 2147483647, %v784
        %v792 = vand.u32 %v791, 8388607
        %v793 = vor.u32 %v792, 8388608
        %v794 = vsub.s32 0, %v793
        %v795 = vadd.s32 %v790, 1
        %vm796 = vcmp.gt.s32.totalorder %v795, 0
        %v797 = vsel %vm796, %v795, 0
        %v798 = vshrl.u32 %v797, 5
        %v799 = vand.u32 %v797, 31
        %v800 = vsub.s32 32, %v799
        %v801 = vshrl.u32 683565275, %v800
        %v802 = vshll.u32 683565275, %v799
        %v803 = vshrl.u32 2475754826, %v800
        %v804 = vor.u32 %v802, %v803
        %v805 = vshll.u32 2475754826, %v799
        %v806 = vshrl.u32 2131351028, %v800
        %v807 = vor.u32 %v805, %v806
        %v808 = vshll.u32 2131351028, %v799
        %v809 = vshrl.u32 2102212464, %v800
        %v810 = vor.u32 %v808, %v809
        %v811 = vshll.u32 2102212464, %v799
        %v812 = vshrl.u32 920167782, %v800
        %v813 = vor.u32 %v811, %v812
        %v814 = vshll.u32 920167782, %v799
        %v815 = vshrl.u32 1326507024, %v800
        %v816 = vor.u32 %v814, %v815
        %vm817 = vcmp.lt.s32.totalorder %v798, 1
        %vm818 = vcmp.lt.s32.totalorder %v798, 2
        %vm819 = vcmp.lt.s32.totalorder %v798, 3
        %vm820 = vcmp.lt.s32.totalorder %v798, 4
        %v821 = vsel %vm817, %v801, %v804
        %v822 = vsel %vm820, %v810, 2102212464
        %v823 = vsel %vm819, %v807, %v822
        %v824 = vsel %vm818, %v821, %v823
        %v825 = vsel %vm817, %v804, %v807
        %v826 = vsel %vm820, %v813, 920167782
        %v827 = vsel %vm819, %v810, %v826
        %v828 = vsel %vm818, %v825, %v827
        %v829 = vsel %vm817, %v807, %v810
        %v830 = vsel %vm820, %v816, 1326507024
        %v831 = vsel %vm819, %v813, %v830
        %v832 = vsel %vm818, %v829, %v831
        %v833 = vshll.u32 %v793, 8
        %v834 = vmul.u32.u64.compose %v833, %v832
        %v835 = vextract.low.u32 %v834
        %v836 = vextract.high.u32 %v834
        %v837 = vmul.u32.u64.compose %v833, %v828
        %v838 = vextract.low.u32 %v837
        %v839 = vextract.high.u32 %v837
        %v840 = vmul.u32 %v833, %v824
        %v841 = vadd.s32 %v836, %v838
        %vm842 = vc.u32 %v836, %v838
        %v843 = vadd.s32 %v839, 1
        %v844 = vsel %vm842, %v843, %v839
        %v845 = vadd.s32 %v840, %v844
        %v846 = vadd.s32 %v845, 536870912
        %v847 = vshrl.u32 %v846, 30
        %v848 = vshll.u32 %v847, 30
        %v849 = vsub.s32 %v845, %v848
        %vm850 = vcmp.lt.s32.totalorder %v849, 0
        %v851 = vsub.s32 0, %v849
        %v852 = vsel %vm850, %v851, %v849
        %v853 = vclz %v852
        %v854 = vsub.s32 %v853, 2
        %vm855 = vcmp.gt.s32.totalorder 0, %v854
        %v856 = vsel %vm855, 0, %v854
        %v857 = vsub.s32 32, %v856
        %v858 = vshll.u32 %v849, %v856
        %v859 = vshrl.u32 %v841, %v857
        %v860 = vor.u32 %v858, %v859
        %v861 = vsub.s32 4294967266, %v856
        %v862 = vadd.s32 %v861, 127
        %v863 = vshll.u32 %v862, 23
        %v864 = vor.u32 4788187, %v863
        %v865 = vand.u32 2147483647, %v864
        %v867 = vcvt.s32.f32 %v860
        %v868 = vmul.f32 %v867, %v865
        %v869 = vxor.u32 %v868, 2147483648
        %v870 = vsel %vm787, %v869, %v868
        %v871 = vsub.s32 4, %v847
        %v872 = vsel %vm787, %v871, %v847
        %v873 = vsel %vm786, %v784, %v870
        %v874 = vsel %vm786, 0, %v872
        %v875 = vcosq.f32.pop %v873
        %v876 = vsinq.f32.pop %v873
        %vm877 = vweird.f32 %v784
        %v878 = vadd.s32 %v874, 3
        %v879 = vand.u32 %v878, 3
        %vm880 = vcmp.lt.s32.totalorder %v879, 2
        %vm881 = vcmp.eq.s32.totalorder %v879, 0
        %v882 = vxor.u32 %v876, 2147483648
        %v883 = vsel %vm881, %v875, %v882
        %vm884 = vcmp.eq.s32.totalorder %v879, 2
        %v885 = vxor.u32 %v875, 2147483648
        %v886 = vsel %vm884, %v885, %v876
        %v887 = vsel %vm880, %v883, %v886
        %v888 = vsel %vm877, nan, %v887
        %889 = vst [vmem:[%s148 + $0x20] sm:$0xff] %v888
        %v890 = vand.u32 2147483647, %v784
        %vm891 = vcmp.le.f32.partialorder %v890, 0.7853982
        %vm892 = vcmp.lt.s32.totalorder %v784, 0
        %v893 = vand.u32 %v784, 2139095040
        %v894 = vshrl.u32 %v893, 23
        %v895 = vsub.s32 %v894, 127
        %v896 = vand.u32 2147483647, %v784
        %v897 = vand.u32 %v896, 8388607
        %v898 = vor.u32 %v897, 8388608
        %v899 = vsub.s32 0, %v898
        %v900 = vadd.s32 %v895, 1
        %vm901 = vcmp.gt.s32.totalorder %v900, 0
        %v902 = vsel %vm901, %v900, 0
        %v903 = vshrl.u32 %v902, 5
        %v904 = vand.u32 %v902, 31
        %v905 = vsub.s32 32, %v904
        %v906 = vshrl.u32 683565275, %v905
        %v907 = vshll.u32 683565275, %v904
        %v908 = vshrl.u32 2475754826, %v905
        %v909 = vor.u32 %v907, %v908
        %v910 = vshll.u32 2475754826, %v904
        %v911 = vshrl.u32 2131351028, %v905
        %v912 = vor.u32 %v910, %v911
        %v913 = vshll.u32 2131351028, %v904
        %v914 = vshrl.u32 2102212464, %v905
        %v915 = vor.u32 %v913, %v914
        %v916 = vshll.u32 2102212464, %v904
        %v917 = vshrl.u32 920167782, %v905
        %v918 = vor.u32 %v916, %v917
        %v919 = vshll.u32 920167782, %v904
        %v920 = vshrl.u32 1326507024, %v905
        %v921 = vor.u32 %v919, %v920
        %vm922 = vcmp.lt.s32.totalorder %v903, 1
        %vm923 = vcmp.lt.s32.totalorder %v903, 2
        %vm924 = vcmp.lt.s32.totalorder %v903, 3
        %vm925 = vcmp.lt.s32.totalorder %v903, 4
        %v926 = vsel %vm922, %v906, %v909
        %v927 = vsel %vm925, %v915, 2102212464
        %v928 = vsel %vm924, %v912, %v927
        %v929 = vsel %vm923, %v926, %v928
        %v930 = vsel %vm922, %v909, %v912
        %v931 = vsel %vm925, %v918, 920167782
        %v932 = vsel %vm924, %v915, %v931
        %v933 = vsel %vm923, %v930, %v932
        %v934 = vsel %vm922, %v912, %v915
        %v935 = vsel %vm925, %v921, 1326507024
        %v936 = vsel %vm924, %v918, %v935
        %v937 = vsel %vm923, %v934, %v936
        %v938 = vshll.u32 %v898, 8
        %v939 = vmul.u32.u64.compose %v938, %v937
        %v940 = vextract.low.u32 %v939
        %v941 = vextract.high.u32 %v939
        %v942 = vmul.u32.u64.compose %v938, %v933
        %v943 = vextract.low.u32 %v942
        %v944 = vextract.high.u32 %v942
        %v945 = vmul.u32 %v938, %v929
        %v946 = vadd.s32 %v941, %v943
        %vm947 = vc.u32 %v941, %v943
        %v948 = vadd.s32 %v944, 1
        %v949 = vsel %vm947, %v948, %v944
        %v950 = vadd.s32 %v945, %v949
        %v951 = vadd.s32 %v950, 536870912
        %v952 = vshrl.u32 %v951, 30
        %v953 = vshll.u32 %v952, 30
        %v954 = vsub.s32 %v950, %v953
        %vm955 = vcmp.lt.s32.totalorder %v954, 0
        %v956 = vsub.s32 0, %v954
        %v957 = vsel %vm955, %v956, %v954
        %v958 = vclz %v957
        %v959 = vsub.s32 %v958, 2
        %vm960 = vcmp.gt.s32.totalorder 0, %v959
        %v961 = vsel %vm960, 0, %v959
        %v962 = vsub.s32 32, %v961
        %v963 = vshll.u32 %v954, %v961
        %v964 = vshrl.u32 %v946, %v962
        %v965 = vor.u32 %v963, %v964
        %v966 = vsub.s32 4294967266, %v961
        %v967 = vadd.s32 %v966, 127
        %v968 = vshll.u32 %v967, 23
        %v969 = vor.u32 4788187, %v968
        %v970 = vand.u32 2147483647, %v969
        %v972 = vcvt.s32.f32 %v965
        %v973 = vmul.f32 %v972, %v970
        %v974 = vxor.u32 %v973, 2147483648
        %v975 = vsel %vm892, %v974, %v973
        %v976 = vsub.s32 4, %v952
        %v977 = vsel %vm892, %v976, %v952
        %v978 = vsel %vm891, %v784, %v975
        %v979 = vsel %vm891, 0, %v977
        %v980 = vcosq.f32.pop %v978
        %v981 = vsinq.f32.pop %v978
        %vm982 = vweird.f32 %v784
        %v983 = vand.u32 %v979, 3
        %vm984 = vcmp.lt.s32.totalorder %v983, 2
        %vm985 = vcmp.eq.s32.totalorder %v983, 0
        %v986 = vxor.u32 %v981, 2147483648
        %v987 = vsel %vm985, %v980, %v986
        %vm988 = vcmp.eq.s32.totalorder %v983, 2
        %v989 = vxor.u32 %v980, 2147483648
        %v990 = vsel %vm988, %v989, %v981
        %v991 = vsel %vm984, %v987, %v990
        %v992 = vsel %vm982, nan, %v991
        %993 = vst [vmem:[%s148 + $0x40] sm:$0xff] %v992
        %s994 = sand.u32 %s68, 1
        %s995 = scalar_lea.sflag [#allocation4], %s994
        %s996 = sand.u32 %s68, 1
        %s997 = smul.addr %s996, 72
        %s998 = scalar_lea.vmem [#allocation5], %s997
        // Predicated region
        $region29: #{tpu_custom_call.1} parent=23 // pred_check
          %p999 = pneg %p78
        $region30: #{tpu_custom_call.1} parent=23 // pred_check_branch
          %1001 = sbr.rel (%p999) target = $region32
        $region31: #{tpu_custom_call.1} parent=23 // pred_region
          %s1003 = ssub.s32 1152, 1152
          %1004 = vsyncadd %s995, %s1003
          %s1005 = smul.addr %s22, 9
          %s1006 = sadd.s32 %s23, %s1005
          %s1007 = smul.addr %s1006, 128
          %s1008 = scalar_lea.hbm %s1, %s1007
          %s1009 = sshll.u32 %s998, 4
          %s1010 = int_to_ptr.vmem [resolvable:$true] %s1009
          %1015 = dma.vmem_to_hbm [thread:$0]  %s1010, 1152, %s1008, %s995, 128, 128, 8
        $region32: #{tpu_custom_call.1} parent=23 // pred_fallthru
          _
      $region24: #{tpu_custom_call.1} parent=5 // pred_fallthru
        _
      %p1016 = scmp.le.s32.totalorder 2, %s13
      // Predicated region
      $region33: #{tpu_custom_call.1} parent=5 // pred_check
        %p1017 = pneg %p1016
      $region34: #{tpu_custom_call.1} parent=5 // pred_check_branch
        %1019 = sbr.rel (%p1017) target = $region36
      $region35: #{tpu_custom_call.1} parent=5 // pred_region
        %s1020 = ssub.s32 %s13, 2
        // Predicated region
        $region37: #{tpu_custom_call.1} parent=35 // pred_check
          %p1021 = pneg %p84
        $region38: #{tpu_custom_call.1} parent=35 // pred_check_branch
          %1023 = sbr.rel (%p1021) target = $region40
        $region39: #{tpu_custom_call.1} parent=35 // pred_region
          %s1024 = sand.u32 %s69, 1
          %s1025 = scalar_lea.sflag [#allocation4], %s1024
          %s1026 = sand.u32 %s69, 1
          %s1027 = smul.addr %s1026, 72
          %s1028 = scalar_lea.vmem [#allocation5], %s1027
          %1029 = dma.done %s1025, 1152
        $region40: #{tpu_custom_call.1} parent=35 // pred_fallthru
          _
      $region36: #{tpu_custom_call.1} parent=5 // pred_fallthru
        _
    $region6: #{tpu_custom_call.1} parent=1 // loop_footer
      %s17 = sadd.s32 1, %s13
    $region7: #{tpu_custom_call.1} parent=1 // loop_footer_branch
      %12 = sbr.rel target = $region3
    $region8: #{tpu_custom_call.1} parent=1 // loop_exit
      _
    %1030 = vsyncpa [#allocation3], 1
    %s1031 = scalar_lea.sflag [#allocation3], 1
    %1032 = vsyncpa %s1031, 1
    %1033 = vsyncpa [#allocation4], 1
    %s1034 = scalar_lea.sflag [#allocation4], 1
    %1035 = vsyncpa %s1034, 1

</llo_original>
